<compile_context>
chip_gen: v7x
topology: tpu7x:2x2x1
jax: 0.10.0
libtpu: 0.0.40
codegen_flags: <defaults>
</compile_context>

<pallas_src>
import jax
import jax.numpy as jnp
from jax.experimental import pallas as pl
from jax.experimental.pallas import tpu as pltpu

LANE = 128


def _round_up(n, m):
    return ((n + m - 1) // m) * m


def _tpu_vmem_capacity_bytes():
    # Generation-aware budget (v7x has only 64 MiB VMEM per TensorCore).
    # Fall back to the smallest (v7x) capacity if the query is unavailable.
    try:
        return int(pltpu.get_tpu_info().vmem_capacity_bytes)
    except Exception:
        return 64 << 20


def _vmem_estimate_bytes(tile, F, Fp, C, x_is, cond_is, w_is):
    # Lane-padded footprints: last dim pads to 128 lanes, sublane dim to 8.
    f_pad = _round_up(F, LANE)
    c_pad = _round_up(C, LANE)
    x_io = 2 * 2 * tile * f_pad * x_is          # x in + out, double-buffered
    cond = 2 * tile * c_pad * cond_is           # condition, double-buffered
    # Constant blocks (counted at 2 buffers to stay conservative even though
    # they are single-buffered via pl.Buffered(1)).
    w = 2 * _round_up(C, 8) * (2 * Fp) * w_is   # fused weight (C, 2Fp)
    b = 2 * 8 * (2 * Fp) * 4                    # fused bias (1, 2Fp)
    y = tile * (2 * Fp) * 4                     # f32 matmul result
    tmp = tile * f_pad * 4                      # f32 elementwise intermediate
    return x_io + cond + w + b + y + tmp


def _pick_batch_tile(B, F, Fp, C, x_dtype, cond_dtype, w_dtype, budget):
    x_is = jnp.dtype(x_dtype).itemsize
    cond_is = jnp.dtype(cond_dtype).itemsize
    w_is = jnp.dtype(w_dtype).itemsize
    row_align = 16 if x_is < 4 else 8

    # Mem-bound kernel: aim for very large tiles; the VMEM budget is the cap.
    target = 4096
    # Keep >= 2 grid steps (ideally >= 4 with >=512-row tiles) so v7x's two
    # TensorCores can both get work from the "parallel" batch axis.
    tile4 = _round_up(max(-(-B // 4), 1), row_align)
    if tile4 >= 512:
        step_cap = tile4                                        # >= 4 steps
    else:
        step_cap = _round_up(max(-(-B // 2), 1), row_align)     # >= 2 steps

    tile = max(min(target, step_cap), row_align)
    tile = _round_up(tile, row_align)
    while tile > row_align and _vmem_estimate_bytes(
            tile, F, Fp, C, x_is, cond_is, w_is) > budget:
        tile -= row_align
    return tile


def film_kernel(x_ref, cond_ref, w_ref, b_ref, o_ref):
    # One wide MXU matmul: y = cond @ [Ws | Wt] + [bs + 1 | bt].
    # w_ref is (C, 2*Fp): lane-dense along the fused out axis, so the MXU RHS
    # needs no per-step relayout/transpose.
    y = jnp.dot(cond_ref[...], w_ref[...],
                preferred_element_type=jnp.float32) + b_ref[...]   # (tile, 2Fp)
    F = o_ref.shape[-1]
    Fp = w_ref.shape[-1] // 2
    scale1 = y[:, :F]          # == 1 + scale (FiLM "+1" folded into the bias)
    shift = y[:, Fp:Fp + F]    # lane-aligned start (Fp is a multiple of 128)
    # x promotes to f32 against scale1 automatically.
    o_ref[...] = (x_ref[...] * scale1 + shift).astype(o_ref.dtype)


def film(x, condition, scale_w, scale_b, shift_w, shift_b, *, batch_tile=None):
    """FiLM forward: out = x * (1 + scale_fc(cond)) + shift_fc(cond).

    x: (B, F)                  condition: (B, C)
    scale_w / shift_w: (F, C)  (PyTorch nn.Linear layout)
    scale_b / shift_b: (F,)
    """
    B, F = x.shape
    C = condition.shape[-1]
    Fp = _round_up(F, LANE)     # pad the fused out axis to a lane multiple
    pad_f = Fp - F

    # Fuse the two Linear layers into one lane-dense RHS. Transpose + pad once
    # in the wrapper (tiny constant, XLA); fold the "+1" into the scale bias.
    w_s = jnp.pad(scale_w.T, ((0, 0), (0, pad_f)))
    w_t = jnp.pad(shift_w.T, ((0, 0), (0, pad_f)))
    w_cat = jnp.concatenate([w_s, w_t], axis=1)                        # (C, 2Fp)
    b_s = jnp.pad(scale_b.astype(jnp.float32) + 1.0, (0, pad_f))
    b_t = jnp.pad(shift_b.astype(jnp.float32), (0, pad_f))
    b_cat = jnp.concatenate([b_s, b_t]).reshape(1, 2 * Fp)             # (1, 2Fp)

    x_is = jnp.dtype(x.dtype).itemsize
    cond_is = jnp.dtype(condition.dtype).itemsize
    w_is = jnp.dtype(w_cat.dtype).itemsize
    row_align = 16 if x_is < 4 else 8

    capacity = _tpu_vmem_capacity_bytes()
    budget = capacity // 2      # per-step working-set budget for tile picking

    if batch_tile is None:
        batch_tile = _pick_batch_tile(B, F, Fp, C, x.dtype, condition.dtype,
                                      w_cat.dtype, budget)
    assert batch_tile % row_align == 0 or batch_tile == B, (
        f"batch_tile={batch_tile} must be a multiple of {row_align} for "
        f"{x.dtype} (sublane alignment) or equal the batch size")

    # No wrapper-side padding of x / condition and no trailing slice: the grid
    # uses cdiv and Pallas masks the ragged tail block's reads and writes, so
    # the kernel touches HBM exactly once per element.
    grid = (pl.cdiv(B, batch_tile),)

    est = _vmem_estimate_bytes(batch_tile, F, Fp, C, x_is, cond_is, w_is)
    # Explicit scoped-VMEM limit: v5e's default is only 16 MiB; cap at 3/4 of
    # physical capacity (~48 MiB on v7x) to leave Mosaic scratch headroom.
    vmem_limit = int(min(max(2 * est, 32 << 20), capacity * 3 // 4))

    out = pl.pallas_call(
        film_kernel,
        out_shape=jax.ShapeDtypeStruct((B, F), x.dtype),
        grid_spec=pltpu.PrefetchScalarGridSpec(
            num_scalar_prefetch=0,
            grid=grid,
            in_specs=[
                pl.BlockSpec((batch_tile, F), lambda i: (i, 0)),   # x tile
                pl.BlockSpec((batch_tile, C), lambda i: (i, 0)),   # condition
                # Constant blocks: DMA'd once; single-buffered to save VMEM.
                pl.BlockSpec((C, 2 * Fp), lambda i: (0, 0),
                             pipeline_mode=pl.Buffered(1)),        # fused W
                pl.BlockSpec((1, 2 * Fp), lambda i: (0, 0),
                             pipeline_mode=pl.Buffered(1)),        # fused bias
            ],
            out_specs=pl.BlockSpec((batch_tile, F), lambda i: (i, 0)),
        ),
        compiler_params=pltpu.CompilerParams(
            dimension_semantics=("parallel",),
            vmem_limit_bytes=vmem_limit,
        ),
    )(x, condition, w_cat, b_cat)
    # TODO(synk): for very large F, add a second grid axis over F-tiles (with
    # per-F-block weight slices) so batch_tile can stay large on v7x's 64 MiB.
    return out


def _reference(x, condition, scale_w, scale_b, shift_w, shift_b):
    scale = condition @ scale_w.T + scale_b
    shift = condition @ shift_w.T + shift_b
    return x * (1.0 + scale) + shift


if __name__ == "__main__":
    F, C = 128, 32  # feature_dim, condition_dim (F multiple of 128 -> lane-dense)

    key = jax.random.PRNGKey(0)
    kx, kc, kw1, kb1, kw2, kb2 = jax.random.split(key, 6)

    # The PyTorch module zero-initializes these (forward == identity); use small
    # deterministic random values so the kernel path is actually exercised.
    scale_w = 0.02 * jax.random.normal(kw1, (F, C), dtype=jnp.float32)
    scale_b = 0.02 * jax.random.normal(kb1, (F,), dtype=jnp.float32)
    shift_w = 0.02 * jax.random.normal(kw2, (F, C), dtype=jnp.float32)
    shift_b = 0.02 * jax.random.normal(kb2, (F,), dtype=jnp.float32)

    # Case 1: explicit small tile -> multi-step grid (exercises the pipeline).
    B1 = 24
    x1 = jax.random.normal(kx, (B1, F), dtype=jnp.float32)
    c1 = jax.random.normal(kc, (B1, C), dtype=jnp.float32)
    out1 = jax.block_until_ready(
        film(x1, c1, scale_w, scale_b, shift_w, shift_b, batch_tile=8))
    ref1 = _reference(x1, c1, scale_w, scale_b, shift_w, shift_b)
    assert out1.shape == (B1, F) and out1.dtype == x1.dtype
    assert jnp.allclose(out1, ref1, atol=1e-5, rtol=1e-5)

    # Case 2: auto tile with a batch that is NOT tile-divisible -> exercises the
    # ragged tail block (no wrapper pad/slice; Pallas masks the boundary).
    B2 = 20
    x2 = jax.random.normal(kc, (B2, F), dtype=jnp.float32)
    c2 = jax.random.normal(kx, (B2, C), dtype=jnp.float32)
    out2 = jax.block_until_ready(
        film(x2, c2, scale_w, scale_b, shift_w, shift_b))
    ref2 = _reference(x2, c2, scale_w, scale_b, shift_w, shift_b)
    assert out2.shape == (B2, F) and out2.dtype == x2.dtype
    assert jnp.allclose(out2, ref2, atol=1e-5, rtol=1e-5)

    print("KERNEL_OK")
</pallas_src>

<mosaic_0001>
module attributes {stable_mosaic.version = 11 : i64} {
  func.func @film_kernel(%arg0: i32, %arg1: memref<8x128xf32, #tpu.memory_space<vmem>>, %arg2: memref<8x32xf32, #tpu.memory_space<vmem>>, %arg3: memref<32x256xf32, #tpu.memory_space<vmem>>, %arg4: memref<1x256xf32, #tpu.memory_space<vmem>>, %arg5: memref<8x128xf32, #tpu.memory_space<vmem>>) attributes {dimension_semantics = [#tpu.dimension_semantics<parallel>], iteration_bounds = array<i64: 3>, scalar_prefetch = 0 : i64, scratch_operands = 0 : i64, tpu.core_type = #tpu.core_type<tc>, window_params = [{transform_indices = @transform_0, window_bounds = array<i64: 8, 128>}, {transform_indices = @transform_1, window_bounds = array<i64: 8, 32>}, {pipeline_mode = #tpu.pipeline_mode<synchronous>, transform_indices = @transform_2, window_bounds = array<i64: 32, 256>}, {pipeline_mode = #tpu.pipeline_mode<synchronous>, transform_indices = @transform_3, window_bounds = array<i64: 1, 256>}, {transform_indices = @transform_4, window_bounds = array<i64: 8, 128>}]} {
    %c0 = arith.constant 0 : index
    %c0_0 = arith.constant 0 : index
    %0 = vector.load %arg2[%c0, %c0_0] : memref<8x32xf32, #tpu.memory_space<vmem>>, vector<8x32xf32>
    %c0_1 = arith.constant 0 : index
    %c0_2 = arith.constant 0 : index
    %1 = vector.load %arg3[%c0_1, %c0_2] : memref<32x256xf32, #tpu.memory_space<vmem>>, vector<32x256xf32>
    %cst = arith.constant dense<0.000000e+00> : vector<8x256xf32>
    %2 = tpu.matmul %0, %1, %cst {dimension_numbers = #tpu.dot_dimension_numbers<[1], [0], [0], [1], [0, 0, 1, 1], [], []>} : vector<8x32xf32>, vector<32x256xf32>, vector<8x256xf32> -> vector<8x256xf32>
    %c0_3 = arith.constant 0 : index
    %c0_4 = arith.constant 0 : index
    %3 = vector.load %arg4[%c0_3, %c0_4] : memref<1x256xf32, #tpu.memory_space<vmem>>, vector<1x256xf32>
    %4 = vector.broadcast %3 : vector<1x256xf32> to vector<8x256xf32>
    %5 = arith.addf %2, %4 : vector<8x256xf32>
    %6 = vector.extract_strided_slice %5 {offsets = [0, 0], sizes = [8, 128], strides = [1, 1]} : vector<8x256xf32> to vector<8x128xf32>
    %7 = vector.extract_strided_slice %5 {offsets = [0, 128], sizes = [8, 128], strides = [1, 1]} : vector<8x256xf32> to vector<8x128xf32>
    %c0_5 = arith.constant 0 : index
    %c0_6 = arith.constant 0 : index
    %8 = vector.load %arg1[%c0_5, %c0_6] : memref<8x128xf32, #tpu.memory_space<vmem>>, vector<8x128xf32>
    %9 = arith.mulf %8, %6 : vector<8x128xf32>
    %10 = arith.addf %9, %7 : vector<8x128xf32>
    %c0_7 = arith.constant 0 : index
    %c0_8 = arith.constant 0 : index
    %11 = vector.load %arg5[%c0_7, %c0_8] : memref<8x128xf32, #tpu.memory_space<vmem>>, vector<8x128xf32>
    tpu.vector_store %arg5[%c0_7, %c0_8], %10 {strides = array<i32>} : memref<8x128xf32, #tpu.memory_space<vmem>>, vector<8x128xf32>,
    return
  }
  func.func @transform_0(%arg0: i32) -> (i32, i32) {
    %c0_i32 = arith.constant 0 : i32
    %c0_i32_0 = arith.constant 0 : i32
    return %arg0, %c0_i32 : i32, i32
  }
  func.func @transform_1(%arg0: i32) -> (i32, i32) {
    %c0_i32 = arith.constant 0 : i32
    %c0_i32_0 = arith.constant 0 : i32
    return %arg0, %c0_i32 : i32, i32
  }
  func.func @transform_2(%arg0: i32) -> (i32, i32) {
    %c0_i32 = arith.constant 0 : i32
    %c0_i32_0 = arith.constant 0 : i32
    %c0_i32_1 = arith.constant 0 : i32
    return %c0_i32, %c0_i32_0 : i32, i32
  }
  func.func @transform_3(%arg0: i32) -> (i32, i32) {
    %c0_i32 = arith.constant 0 : i32
    %c0_i32_0 = arith.constant 0 : i32
    %c0_i32_1 = arith.constant 0 : i32
    return %c0_i32, %c0_i32_0 : i32, i32
  }
  func.func @transform_4(%arg0: i32) -> (i32, i32) {
    %c0_i32 = arith.constant 0 : i32
    %c0_i32_0 = arith.constant 0 : i32
    return %arg0, %c0_i32 : i32, i32
  }
}

</mosaic_0001>

<llo_original>
// kernel: tpu_custom_call.1
$region0: #{tpu_custom_call.1}
  #allocation0 [shape = 'u32[]', space=smem, size = 0x4, offset = 0x4, fixed_abs, tag = 'smem constant byte address 0x4 - core index']
  #allocation1 [shape = 'u32[144,128]{1,0:T(1,128)}', space=vmem, size = 0x12000, scoped, tag = 'internal scratch']
  %s0 = inlined_call_operand.hbm [shape: f32[24,128], index: 0, kind: input, shape index: {}]
  %s1 = inlined_call_operand.hbm [shape: f32[24,32], index: 1, kind: input, shape index: {}]
  %s2 = inlined_call_operand.hbm [shape: f32[32,256], index: 2, kind: input, shape index: {}]
  %s3 = inlined_call_operand.vmem [shape: f32[1,256], index: 3, kind: input, shape index: {}]
  %s4 = inlined_call_operand.hbm [shape: f32[24,128], index: 4, kind: output, shape index: {}]
  %s5 = sld [smem:[#allocation0]]
  $region61: #{tpu_custom_call.1} parent=0
    _
  %s7 = ssub.s32 1, %s5
  %s8 = scalar_select 0, %s7, %s5
  $region1: #{tpu_custom_call.1} parent=0
    #allocation2 [shape = 'u8[8192]{0}', space=vmem, size = 0x2000, scoped, tag = 'input window, operand 0']
    #allocation3 [shape = 's32[2]{0}', space=sflag, size = 0x8, scoped, tag = 'scoped memory for tpu_custom_call.1']
    #allocation4 [shape = 's32[2]{0}', space=sflag, size = 0x8, scoped, tag = 'scoped memory for tpu_custom_call.1']
    #allocation5 [shape = 'u8[8192]{0}', space=vmem, size = 0x2000, scoped, tag = 'input window, operand 1']
    #allocation6 [shape = 's32[2]{0}', space=sflag, size = 0x8, scoped, tag = 'scoped memory for tpu_custom_call.1']
    #allocation7 [shape = 'u8[32768]{0}', space=vmem, size = 0x8000, scoped, tag = 'input window, operand 2, single buffered']
    #allocation8 [shape = 'u8[8192]{0}', space=vmem, size = 0x2000, scoped, tag = 'output window, operand 0']
    %9 = vsyncpa [#allocation3], 0
    %s10 = scalar_lea.sflag [#allocation3], 1
    %11 = vsyncpa %s10, 0
    %12 = vsyncpa [#allocation6], 0
    %s13 = scalar_lea.sflag [#allocation6], 1
    %14 = vsyncpa %s13, 0
    %15 = vsyncpa [#allocation4], 0
    %s16 = scalar_lea.sflag [#allocation4], 1
    %17 = vsyncpa %s16, 0
    loop: start=0, step=1, limit=5
    $region2: #{tpu_custom_call.1} parent=1 // loop_pre_header
      _
    $region3: #{tpu_custom_call.1} parent=1 // loop_header
      %s19 = sphi 0, %s23
      %p20 = scmp.ge.s32.totalorder %s19, 5
      %s29 = sphi 0, %s31
      %s32 = sphi 0, %s29
      %s33 = sphi 0, %s32
      %s49 = sphi 0, %s33
      %s55 = sphi 0, %s57
      %s58 = sphi 0, %s55
      %s59 = sphi 0, %s58
      %s75 = sphi 0, %s59
      %s79 = sphi 0, %s79
      %s81 = sphi 0, %s79
      %s82 = sphi 0, %s81
      %s96 = sphi 0, %s82
      %s100 = sphi 0, %s100
      %s102 = sphi 0, %s100
      %s103 = sphi 0, %s102
      %s117 = sphi 0, %s103
      %s123 = sphi 0, %s125
      %s126 = sphi 0, %s123
      %s127 = sphi 0, %s126
      %s143 = sphi 0, %s127
    $region4: #{tpu_custom_call.1} parent=1 // loop_header_branch
      %22 = sbr.rel (%p20) target = $region8
    $region5: #{tpu_custom_call.1} parent=1 // loop_body
      %s24 = ssub.s32 %s19, 1
      %s25 = ssub.s32 %s19, 2
      %s26 = sadd.s32 %s19, 1
      %s27 = ssub.s32 %s19, %s26
      %p28 = scmp.eq.s32.totalorder %s27, 0
      %s30 = sadd.s32 %s29, 1
      %s31 = scalar_select %p28, %s29, %s30
      %p34 = pneg %p28
      %p35 = scmp.eq.s32.totalorder %s19, 2
      %p36 = por %p34, %p35
      %p37 = scmp.ne.s32.totalorder %s29, %s32
      %p38 = scmp.eq.s32.totalorder %s19, 0
      %p39 = por %p37, %p38
      %p40 = scmp.ne.s32.totalorder %s29, %s32
      %p41 = scmp.eq.s32.totalorder %s24, 2
      %p42 = por %p40, %p41
      %p43 = scmp.ne.s32.totalorder %s32, %s33
      %p44 = scmp.eq.s32.totalorder %s24, 0
      %p45 = por %p43, %p44
      %p46 = scmp.ne.s32.totalorder %s32, %s33
      %p47 = scmp.eq.s32.totalorder %s25, 2
      %p48 = por %p46, %p47
      %p50 = scmp.ne.s32.totalorder %s33, %s49
      %p51 = scmp.eq.s32.totalorder %s25, 0
      %p52 = por %p50, %p51
      %s53 = ssub.s32 %s19, %s26
      %p54 = scmp.eq.s32.totalorder %s53, 0
      %s56 = sadd.s32 %s55, 1
      %s57 = scalar_select %p54, %s55, %s56
      %p60 = pneg %p54
      %p61 = scmp.eq.s32.totalorder %s19, 2
      %p62 = por %p60, %p61
      %p63 = scmp.ne.s32.totalorder %s55, %s58
      %p64 = scmp.eq.s32.totalorder %s19, 0
      %p65 = por %p63, %p64
      %p66 = scmp.ne.s32.totalorder %s55, %s58
      %p67 = scmp.eq.s32.totalorder %s24, 2
      %p68 = por %p66, %p67
      %p69 = scmp.ne.s32.totalorder %s58, %s59
      %p70 = scmp.eq.s32.totalorder %s24, 0
      %p71 = por %p69, %p70
      %p72 = scmp.ne.s32.totalorder %s58, %s59
      %p73 = scmp.eq.s32.totalorder %s25, 2
      %p74 = por %p72, %p73
      %p76 = scmp.ne.s32.totalorder %s59, %s75
      %p77 = scmp.eq.s32.totalorder %s25, 0
      %p78 = por %p76, %p77
      %s80 = sadd.s32 %s79, 1
      %p83 = scmp.eq.s32.totalorder %s19, 2
      %p84 = scmp.ne.s32.totalorder %s79, %s81
      %p85 = scmp.eq.s32.totalorder %s19, 0
      %p86 = por %p84, %p85
      %p87 = scmp.ne.s32.totalorder %s79, %s81
      %p88 = scmp.eq.s32.totalorder %s24, 2
      %p89 = por %p87, %p88
      %p90 = scmp.ne.s32.totalorder %s81, %s82
      %p91 = scmp.eq.s32.totalorder %s24, 0
      %p92 = por %p90, %p91
      %p93 = scmp.ne.s32.totalorder %s81, %s82
      %p94 = scmp.eq.s32.totalorder %s25, 2
      %p95 = por %p93, %p94
      %p97 = scmp.ne.s32.totalorder %s82, %s96
      %p98 = scmp.eq.s32.totalorder %s25, 0
      %p99 = por %p97, %p98
      %s101 = sadd.s32 %s100, 1
      %p104 = scmp.eq.s32.totalorder %s19, 2
      %p105 = scmp.ne.s32.totalorder %s100, %s102
      %p106 = scmp.eq.s32.totalorder %s19, 0
      %p107 = por %p105, %p106
      %p108 = scmp.ne.s32.totalorder %s100, %s102
      %p109 = scmp.eq.s32.totalorder %s24, 2
      %p110 = por %p108, %p109
      %p111 = scmp.ne.s32.totalorder %s102, %s103
      %p112 = scmp.eq.s32.totalorder %s24, 0
      %p113 = por %p111, %p112
      %p114 = scmp.ne.s32.totalorder %s102, %s103
      %p115 = scmp.eq.s32.totalorder %s25, 2
      %p116 = por %p114, %p115
      %p118 = scmp.ne.s32.totalorder %s103, %s117
      %p119 = scmp.eq.s32.totalorder %s25, 0
      %p120 = por %p118, %p119
      %s121 = ssub.s32 %s19, %s26
      %p122 = scmp.eq.s32.totalorder %s121, 0
      %s124 = sadd.s32 %s123, 1
      %s125 = scalar_select %p122, %s123, %s124
      %p128 = pneg %p122
      %p129 = scmp.eq.s32.totalorder %s19, 2
      %p130 = por %p128, %p129
      %p131 = scmp.ne.s32.totalorder %s123, %s126
      %p132 = scmp.eq.s32.totalorder %s19, 0
      %p133 = por %p131, %p132
      %p134 = scmp.ne.s32.totalorder %s123, %s126
      %p135 = scmp.eq.s32.totalorder %s24, 2
      %p136 = por %p134, %p135
      %p137 = scmp.ne.s32.totalorder %s126, %s127
      %p138 = scmp.eq.s32.totalorder %s24, 0
      %p139 = por %p137, %p138
      %p140 = scmp.ne.s32.totalorder %s126, %s127
      %p141 = scmp.eq.s32.totalorder %s25, 2
      %p142 = por %p140, %p141
      %p144 = scmp.ne.s32.totalorder %s127, %s143
      %p145 = scmp.eq.s32.totalorder %s25, 0
      %p146 = por %p144, %p145
      %p147 = scmp.le.s32.totalorder 1, %s19
      %p148 = scmp.lt.s32.totalorder %s19, 4
      %p149 = pnand %p147, %p148
      %p150 = pneg %p149
      // Predicated region
      $region9: #{tpu_custom_call.1} parent=5 // pred_check
        _
      $region10: #{tpu_custom_call.1} parent=5 // pred_check_branch
        %152 = sbr.rel (%p149) target = $region12
      $region11: #{tpu_custom_call.1} parent=5 // pred_region
        %s153 = ssub.s32 %s19, 1
        // Predicated region
        $region13: #{tpu_custom_call.1} parent=11 // pred_check
          %p154 = pneg %p92
        $region14: #{tpu_custom_call.1} parent=11 // pred_check_branch
          %156 = sbr.rel (%p154) target = $region16
        $region15: #{tpu_custom_call.1} parent=11 // pred_region
          %s158 = ssub.s32 1024, 1024
          %159 = vsyncadd [#allocation6], %s158
          %s160 = sshll.u32 [#allocation7], 4
          %s161 = int_to_ptr.vmem [resolvable:$true] %s160
          %166 = dma.hbm_to_vmem [thread:$0]  %s2, 1024, %s161, [#allocation6], 256, 256, 16
        $region16: #{tpu_custom_call.1} parent=11 // pred_fallthru
          _
        // Predicated region
        $region17: #{tpu_custom_call.1} parent=11 // pred_check
          %p167 = pneg %p113
        $region18: #{tpu_custom_call.1} parent=11 // pred_check_branch
          %169 = sbr.rel (%p167) target = $region20
        $region19: #{tpu_custom_call.1} parent=11 // pred_region
          _
        $region20: #{tpu_custom_call.1} parent=11 // pred_fallthru
          _
      $region12: #{tpu_custom_call.1} parent=5 // pred_fallthru
        _
      %p170 = scmp.lt.s32.totalorder %s19, 3
      // Predicated region
      $region21: #{tpu_custom_call.1} parent=5 // pred_check
        %p171 = pneg %p170
      $region22: #{tpu_custom_call.1} parent=5 // pred_check_branch
        %173 = sbr.rel (%p171) target = $region24
      $region23: #{tpu_custom_call.1} parent=5 // pred_region
        // Predicated region
        $region25: #{tpu_custom_call.1} parent=23 // pred_check
          %p174 = pneg %p39
        $region26: #{tpu_custom_call.1} parent=23 // pred_check_branch
          %176 = sbr.rel (%p174) target = $region28
        $region27: #{tpu_custom_call.1} parent=23 // pred_region
          %s177 = sand.u32 %s29, 1
          %s178 = scalar_lea.sflag [#allocation3], %s177
          %s179 = sand.u32 %s29, 1
          %s180 = smul.addr %s179, 8
          %s181 = scalar_lea.vmem [#allocation2], %s180
          %s183 = ssub.s32 128, 128
          %184 = vsyncadd %s178, %s183
          %s185 = smul.addr %s19, 128
          %s186 = scalar_lea.hbm %s0, %s185
          %s188 = sshll.u32 %s181, 4
          %s189 = int_to_ptr.vmem [resolvable:$true] %s188
          %191 = dma.hbm_to_vmem [thread:$0]  %s186, 128, %s189, %s178
        $region28: #{tpu_custom_call.1} parent=23 // pred_fallthru
          _
        // Predicated region
        $region29: #{tpu_custom_call.1} parent=23 // pred_check
          %p192 = pneg %p65
        $region30: #{tpu_custom_call.1} parent=23 // pred_check_branch
          %194 = sbr.rel (%p192) target = $region32
        $region31: #{tpu_custom_call.1} parent=23 // pred_region
          %s195 = sand.u32 %s19, 1
          %s196 = scalar_lea.sflag [#allocation6], %s195
          %s197 = sand.u32 %s55, 1
          %s198 = smul.addr %s197, 8
          %s199 = scalar_lea.vmem [#allocation5], %s198
          %s201 = ssub.s32 128, 128
          %202 = vsyncadd %s196, %s201
          %s203 = smul.addr %s19, 128
          %s204 = scalar_lea.hbm %s1, %s203
          %s206 = sshll.u32 %s199, 4
          %s207 = int_to_ptr.vmem [resolvable:$true] %s206
          %209 = dma.hbm_to_vmem [thread:$0]  %s204, 128, %s207, %s196
        $region32: #{tpu_custom_call.1} parent=23 // pred_fallthru
          _
      $region24: #{tpu_custom_call.1} parent=5 // pred_fallthru
        _
      %p210 = scmp.le.s32.totalorder 1, %s19
      %p211 = scmp.lt.s32.totalorder %s19, 4
      %p212 = pnand %p210, %p211
      %p213 = pneg %p212
      // Predicated region
      $region33: #{tpu_custom_call.1} parent=5 // pred_check
        _
      $region34: #{tpu_custom_call.1} parent=5 // pred_check_branch
        %215 = sbr.rel (%p212) target = $region36
      $region35: #{tpu_custom_call.1} parent=5 // pred_region
        %s216 = ssub.s32 %s19, 1
        %s217 = sand.u32 %s32, 1
        %s218 = scalar_lea.sflag [#allocation3], %s217
        %s219 = sand.u32 %s32, 1
        %s220 = smul.addr %s219, 8
        %s221 = scalar_lea.vmem [#allocation2], %s220
        // Predicated region
        $region37: #{tpu_custom_call.1} parent=35 // pred_check
          %p222 = pneg %p45
        $region38: #{tpu_custom_call.1} parent=35 // pred_check_branch
          %224 = sbr.rel (%p222) target = $region40
        $region39: #{tpu_custom_call.1} parent=35 // pred_region
          %225 = dma.done %s218, 128
        $region40: #{tpu_custom_call.1} parent=35 // pred_fallthru
          _
        %s226 = sand.u32 %s24, 1
        %s227 = scalar_lea.sflag [#allocation6], %s226
        %s228 = sand.u32 %s58, 1
        %s229 = smul.addr %s228, 8
        %s230 = scalar_lea.vmem [#allocation5], %s229
        // Predicated region
        $region41: #{tpu_custom_call.1} parent=35 // pred_check
          %p231 = pneg %p71
        $region42: #{tpu_custom_call.1} parent=35 // pred_check_branch
          %233 = sbr.rel (%p231) target = $region44
        $region43: #{tpu_custom_call.1} parent=35 // pred_region
          %234 = dma.done %s227, 128
        $region44: #{tpu_custom_call.1} parent=35 // pred_fallthru
          _
        // Predicated region
        $region45: #{tpu_custom_call.1} parent=35 // pred_check
          %p235 = pneg %p92
        $region46: #{tpu_custom_call.1} parent=35 // pred_check_branch
          %237 = sbr.rel (%p235) target = $region48
        $region47: #{tpu_custom_call.1} parent=35 // pred_region
          %238 = dma.done [#allocation6], 1024
        $region48: #{tpu_custom_call.1} parent=35 // pred_fallthru
          _
        %s239 = sand.u32 %s32, 1
        %s240 = scalar_lea.sflag [#allocation3], %s239
        %s241 = sand.u32 %s32, 1
        %s242 = smul.addr %s241, 8
        %s243 = scalar_lea.vmem [#allocation2], %s242
        %p244 = pneg %p45
        %p245 = pneg %p42
        %s246 = sand.u32 %s24, 1
        %s247 = scalar_lea.sflag [#allocation6], %s246
        %s248 = sand.u32 %s58, 1
        %s249 = smul.addr %s248, 8
        %s250 = scalar_lea.vmem [#allocation5], %s249
        %p251 = pneg %p71
        %p252 = pneg %p68
        %p253 = pneg %p92
        %p254 = pneg %p89
        %p255 = pneg %p113
        %p256 = pneg %p110
        %p257 = pneg %p139
        %p258 = pneg %p136
        %s259 = sand.u32 %s126, 1
        %s260 = scalar_lea.sflag [#allocation4], %s259
        %s261 = sand.u32 %s126, 1
        %s262 = smul.addr %s261, 8
        %s263 = scalar_lea.vmem [#allocation8], %s262
        %v264 = vld [vmem:[%s230] sm:$0xff]
        %v265 = vld [vmem:[#allocation7] sm:$0xff]
        %v266 = vld [vmem:[#allocation7 + $0x8] sm:$0xff]
        %v267 = vld [vmem:[#allocation7 + $0x10] sm:$0xff]
        %v268 = vld [vmem:[#allocation7 + $0x18] sm:$0xff]
        %v269 = vld [vmem:[#allocation7 + $0x20] sm:$0xff]
        %v270 = vld [vmem:[#allocation7 + $0x28] sm:$0xff]
        %v271 = vld [vmem:[#allocation7 + $0x30] sm:$0xff]
        %v272 = vld [vmem:[#allocation7 + $0x38] sm:$0xff]
        %v273 = vld [vmem:[%s3] sm:$0x3]
        %v275 = vlaneseq
        %v276 = vshrl.u32 %v275, 7
        %v277 = vsub.s32 0, %v276
        %v278 = vrot.slane %v273, %v277
        %v279 = vlaneseq
        %v280 = vshrl.u32 %v279, 7
        %v281 = vsub.s32 1, %v280
        %v282 = vrot.slane %v273, %v281
        %vm285 = vcmask 261120
        %v287 = vsel %vm285, %v264, 0
        %289 = vmatprep.subr.mxu0 %v266
        %290 = vmatpush1.msra.mxu0 %v265
        %291 = vmatprep.subr.mxu0 %v268
        %292 = vmatpush1.msra.mxu0 %v267
        %293 = vmatprep.subr.mxu0 %v270
        %294 = vmatpush1.msra.mxu0 %v269
        %295 = vmatprep.subr.mxu0 %v272
        %296 = vmatpush1.msra.mxu0 %v271
        %297 = vmatprep.subr.mxu0 0.0
        %298 = vmatpush1.msra.mxu0 0.0
        %299 = vmatprep.subr.mxu0 0.0
        %300 = vmatpush1.msra.mxu0 0.0
        %301 = vmatprep.subr.mxu0 0.0
        %302 = vmatpush1.msra.mxu0 0.0
        %303 = vmatprep.subr.mxu0 0.0
        %304 = vmatpush1.msra.mxu0 0.0
        %305 = vmatprep.subr.mxu0 0.0
        %306 = vmatpush1.msra.mxu0 0.0
        %307 = vmatprep.subr.mxu0 0.0
        %308 = vmatpush1.msra.mxu0 0.0
        %309 = vmatprep.subr.mxu0 0.0
        %310 = vmatpush1.msra.mxu0 0.0
        %311 = vmatprep.subr.mxu0 0.0
        %312 = vmatpush1.msra.mxu0 0.0
        %313 = vmatprep.subr.mxu0 0.0
        %314 = vmatpush1.msra.mxu0 0.0
        %315 = vmatprep.subr.mxu0 0.0
        %316 = vmatpush1.msra.mxu0 0.0
        %317 = vmatprep.subr.mxu0 0.0
        %318 = vmatpush1.msra.mxu0 0.0
        %319 = vmatprep.subr.mxu0 0.0
        %320 = vmatpush1.msra.mxu0 0.0
        %321 = vmatprep.subr.mxu0 0.0
        %322 = vmatpush1.msra.mxu0 0.0
        %323 = vmatprep.subr.mxu0 0.0
        %324 = vmatpush1.msra.mxu0 0.0
        %325 = vmatprep.subr.mxu0 0.0
        %326 = vmatpush1.msra.mxu0 0.0
        %327 = vmatprep.subr.mxu0 0.0
        %328 = vmatpush1.msra.mxu0 0.0
        %329 = vmatprep.subr.mxu0 0.0
        %330 = vmatpush1.msra.mxu0 0.0
        %331 = vmatprep.subr.mxu0 0.0
        %332 = vmatpush1.msra.mxu0 0.0
        %333 = vmatprep.subr.mxu0 0.0
        %334 = vmatpush1.msra.mxu0 0.0
        %335 = vmatprep.subr.mxu0 0.0
        %336 = vmatpush1.msra.mxu0 0.0
        %337 = vmatprep.subr.mxu0 0.0
        %338 = vmatpush1.msra.mxu0 0.0
        %339 = vmatprep.subr.mxu0 0.0
        %340 = vmatpush1.msra.mxu0 0.0
        %341 = vmatprep.subr.mxu0 0.0
        %342 = vmatpush1.msra.mxu0 0.0
        %343 = vmatprep.subr.mxu0 0.0
        %344 = vmatpush1.msra.mxu0 0.0
        %345 = vmatprep.subr.mxu0 0.0
        %346 = vmatpush1.msra.mxu0 0.0
        %347 = vmatprep.subr.mxu0 0.0
        %348 = vmatpush1.msra.mxu0 0.0
        %349 = vmatprep.subr.mxu0 0.0
        %350 = vmatpush1.msra.mxu0 0.0
        %351 = vmatprep.subr.mxu0 0.0
        %352 = vmatpush1.msra.mxu0 0.0
        %353 = vmatprep.mubr.f32.mxu0 0.0
        %354 = vmatmul.mubr.f32.gmra.mrb[0].mxu0 %v287
        %v355 = vpop.f32.mrb[0].mxu0
        %v356 = vadd.f32 %v278, %v355
        %v357 = vpop.f32.mrb[0].mxu0
        %v358 = vadd.f32 %v282, %v357
        %359 = vdwg.mxu0
        %v360 = vld [vmem:[%s221] sm:$0xff]
        %v361 = vmul.f32 %v360, %v356
        %v362 = vadd.f32 %v361, %v358
        %363 = vst [vmem:[%s263] sm:$0xff] %v362
        %s364 = sand.u32 %s126, 1
        %s365 = scalar_lea.sflag [#allocation4], %s364
        %s366 = sand.u32 %s126, 1
        %s367 = smul.addr %s366, 8
        %s368 = scalar_lea.vmem [#allocation8], %s367
        // Predicated region
        $region49: #{tpu_custom_call.1} parent=35 // pred_check
          %p369 = pneg %p136
        $region50: #{tpu_custom_call.1} parent=35 // pred_check_branch
          %371 = sbr.rel (%p369) target = $region52
        $region51: #{tpu_custom_call.1} parent=35 // pred_region
          %s373 = ssub.s32 128, 128
          %374 = vsyncadd %s365, %s373
          %s375 = smul.addr %s24, 128
          %s376 = scalar_lea.hbm %s4, %s375
          %s378 = sshll.u32 %s368, 4
          %s379 = int_to_ptr.vmem [resolvable:$true] %s378
          %381 = dma.vmem_to_hbm [thread:$0]  %s379, 128, %s376, %s365
        $region52: #{tpu_custom_call.1} parent=35 // pred_fallthru
          _
      $region36: #{tpu_custom_call.1} parent=5 // pred_fallthru
        _
      %p382 = scmp.le.s32.totalorder 2, %s19
      // Predicated region
      $region53: #{tpu_custom_call.1} parent=5 // pred_check
        %p383 = pneg %p382
      $region54: #{tpu_custom_call.1} parent=5 // pred_check_branch
        %385 = sbr.rel (%p383) target = $region56
      $region55: #{tpu_custom_call.1} parent=5 // pred_region
        %s386 = ssub.s32 %s19, 2
        // Predicated region
        $region57: #{tpu_custom_call.1} parent=55 // pred_check
          %p387 = pneg %p142
        $region58: #{tpu_custom_call.1} parent=55 // pred_check_branch
          %389 = sbr.rel (%p387) target = $region60
        $region59: #{tpu_custom_call.1} parent=55 // pred_region
          %s390 = sand.u32 %s127, 1
          %s391 = scalar_lea.sflag [#allocation4], %s390
          %s392 = sand.u32 %s127, 1
          %s393 = smul.addr %s392, 8
          %s394 = scalar_lea.vmem [#allocation8], %s393
          %395 = dma.done %s391, 128
        $region60: #{tpu_custom_call.1} parent=55 // pred_fallthru
          _
      $region56: #{tpu_custom_call.1} parent=5 // pred_fallthru
        _
    $region6: #{tpu_custom_call.1} parent=1 // loop_footer
      %s23 = sadd.s32 1, %s19
    $region7: #{tpu_custom_call.1} parent=1 // loop_footer_branch
      %18 = sbr.rel target = $region3
    $region8: #{tpu_custom_call.1} parent=1 // loop_exit
      _
    %396 = vsyncpa [#allocation3], 1
    %s397 = scalar_lea.sflag [#allocation3], 1
    %398 = vsyncpa %s397, 1
    %399 = vsyncpa [#allocation6], 1
    %s400 = scalar_lea.sflag [#allocation6], 1
    %401 = vsyncpa %s400, 1
    %402 = vsyncpa [#allocation4], 1
    %s403 = scalar_lea.sflag [#allocation4], 1
    %404 = vsyncpa %s403, 1

</llo_original>
